<compile_context>
chip_gen: v6e
topology: v6e:2x2x1
jax: 0.10.0
libtpu: 0.0.40
codegen_flags: <defaults>
</compile_context>

<pallas_src>
import functools

import jax
import jax.numpy as jnp
from jax import lax
from jax.experimental import pallas as pl
from jax.experimental.pallas import tpu as pltpu

GAMMA = 1.5
ALPHA = 0.25
LANES = 128
ROW_ALIGN = 16            # supports bf16 (16,128) tiling for native-dtype inputs
TARGET_ROW_TILE = 8192    # 8192x128 f32 input block = 4 MiB (x2 inputs x2 buffers = 16 MiB)
CHUNK_ROWS = 1024         # in-kernel sub-chunk so intermediates stay small in VMEM
N_SPLITS = 2              # leading "parallel" grid axis (both TCs on v7x)


def _cdiv(a, b):
    return -(-a // b)


def _round_up(a, b):
    return _cdiv(a, b) * b


def _focal_loss_kernel(pred_ref, truth_ref, out_ref, *, gamma, alpha, full_rows,
                       rem_lanes, row_tile, n_k, chunk, n_full, rem):
    s = pl.program_id(0)          # parallel split (one per TC on v7x)
    k = pl.program_id(1)          # sequential reduction axis

    @pl.when(k == 0)
    def _():
        out_ref[...] = jnp.zeros_like(out_ref)

    block_idx = s * n_k + k
    block_row0 = block_idx * row_tile

    def partial_sum(r0, nrows, mask_tail):
        """Compute the focal loss for rows [r0, r0+nrows) of this block and reduce
        it to a single vreg-shaped (8,128) partial sum (VPU adds only)."""
        x = pred_ref[pl.ds(r0, nrows), :].astype(jnp.float32)
        y = truth_ref[pl.ds(r0, nrows), :].astype(jnp.float32)

        # Stable BCE-with-logits; e = exp(-|x|) is reused to rebuild the sigmoid,
        # so only one exp per element.
        e = jnp.exp(-jnp.abs(x))
        bce = jnp.maximum(x, 0.0) - x * y + jnp.log1p(e)

        d = 1.0 + e
        r = pl.reciprocal(d, approx=True)
        inv = r * (2.0 - d * r)                 # one Newton step -> ~1e-7 rel. error
        p = jnp.where(x >= 0.0, inv, e * inv)   # == sigmoid(x)

        # With y in {0,1} (holds for soft targets too):
        #   1 - p_t = p + y - 2*y*p ; alpha_factor = (1-alpha) + y*(2*alpha - 1)
        z = jnp.maximum(p + y - 2.0 * y * p, 0.0)   # clamp: approx-rcp rounding safety
        af = (1.0 - alpha) + y * (2.0 * alpha - 1.0)

        if gamma == 0.0:
            mod = jnp.ones_like(z)
        elif gamma == 1.0:
            mod = z
        elif gamma == 1.5:
            mod = z * jnp.sqrt(z)
        elif gamma == 2.0:
            mod = z * z
        else:
            mod = jnp.where(z > 0.0, z ** gamma, 0.0)   # guard pow(0, g) NaN

        loss = bce * af * mod

        if mask_tail:
            # Only the single tail block pays for this (hoisted out of the hot path).
            rid = block_row0 + r0 + lax.broadcasted_iota(jnp.int32, (nrows, LANES), 0)
            lid = lax.broadcasted_iota(jnp.int32, (nrows, LANES), 1)
            valid = (rid < full_rows) | ((rid == full_rows) & (lid < rem_lanes))
            loss = jnp.where(valid, loss, 0.0)

        return loss.reshape(nrows // 8, 8, LANES).sum(axis=0)

    def accumulate(mask_tail):
        if n_full == 1:
            acc = partial_sum(0, chunk, mask_tail)
        else:
            acc = lax.fori_loop(
                0, n_full,
                lambda c, a: a + partial_sum(
                    pl.multiple_of(c * chunk, chunk), chunk, mask_tail),
                jnp.zeros((8, LANES), jnp.float32),
                unroll=True)
        if rem:
            acc = acc + partial_sum(n_full * chunk, rem, mask_tail)
        out_ref[0] += acc

    # Only the block containing the padded/ragged tail needs the mask (row-count
    # arithmetic only -> no int32 flat-index overflow for large tensors).
    needs_mask = (block_idx + 1) * row_tile > full_rows

    @pl.when(jnp.logical_not(needs_mask))
    def _():
        accumulate(False)

    @pl.when(needs_mask)
    def _():
        accumulate(True)


def focal_loss(prediction, truth, gamma=GAMMA, alpha=ALPHA, reduction="mean",
               target_row_tile=TARGET_ROW_TILE, chunk_rows=CHUNK_ROWS,
               n_splits=N_SPLITS, vmem_limit_bytes=48 * 1024 * 1024):
    """prediction, truth: same-shape arrays (e.g. NCHW), any float/int dtype.
    Returns the scalar focal loss ('mean' by default, matching BCEWithLogitsLoss)."""
    assert prediction.shape == truth.shape
    numel = int(prediction.size)
    assert numel > 0
    if reduction not in ("mean", "sum"):
        # TODO(synk): reduction='none' would need a full elementwise output slab; only the
        # fused 'mean'/'sum' reductions are implemented in this kernel.
        raise NotImplementedError(f"reduction={reduction!r} not supported")

    rows = _cdiv(numel, LANES)
    padded_rows = _round_up(rows, ROW_ALIGN)          # pad target: at most 2047 elements

    # Tile selection: big, multiple of 16, no bigger than the (rounded) problem.
    row_tile = min(_round_up(target_row_tile, ROW_ALIGN), padded_rows)
    n_blocks = _cdiv(padded_rows, row_tile)
    splits = n_splits if n_blocks % n_splits == 0 else 1
    if splits == 1 and n_splits > 1 and n_blocks > 1:
        # Try to recover the 2-way split by nudging the block count up / tile down.
        nb = _round_up(n_blocks, n_splits)
        rt = _round_up(_cdiv(padded_rows, nb), ROW_ALIGN)
        nb2 = _cdiv(padded_rows, rt)
        if nb2 % n_splits == 0:
            row_tile, n_blocks, splits = rt, nb2, n_splits
    n_k = n_blocks // splits

    chunk = min(_round_up(chunk_rows, ROW_ALIGN), row_tile)
    n_full = row_tile // chunk
    rem = row_tile - n_full * chunk                   # multiple of 16 (possibly 0)

    # Native dtypes, no wrapper casts; pad only to a (16,128) boundary when needed.
    pred_flat = jnp.ravel(prediction)
    truth_flat = jnp.ravel(truth)
    pad = padded_rows * LANES - numel
    if pad:
        pred_flat = jnp.pad(pred_flat, (0, pad))
        truth_flat = jnp.pad(truth_flat, (0, pad))
    pred2d = pred_flat.reshape(padded_rows, LANES)
    truth2d = truth_flat.reshape(padded_rows, LANES)

    kernel = functools.partial(
        _focal_loss_kernel, gamma=float(gamma), alpha=float(alpha),
        full_rows=numel // LANES, rem_lanes=numel % LANES,
        row_tile=row_tile, n_k=n_k, chunk=chunk, n_full=n_full, rem=rem)

    partials = pl.pallas_call(
        kernel,
        out_shape=jax.ShapeDtypeStruct((splits, 8, LANES), jnp.float32),
        grid_spec=pltpu.PrefetchScalarGridSpec(
            num_scalar_prefetch=0,
            grid=(splits, n_k),
            in_specs=[
                pl.BlockSpec((row_tile, LANES), lambda s, k, n_k=n_k: (s * n_k + k, 0)),
                pl.BlockSpec((row_tile, LANES), lambda s, k, n_k=n_k: (s * n_k + k, 0)),
            ],
            out_specs=pl.BlockSpec((1, 8, LANES), lambda s, k: (s, 0, 0)),
        ),
        compiler_params=pltpu.CompilerParams(
            dimension_semantics=("parallel", "arbitrary"),
            vmem_limit_bytes=vmem_limit_bytes,
        ),
    )(pred2d, truth2d)

    total = jnp.sum(partials)
    if reduction == "sum":
        return total
    return total / numel


def _reference_focal_loss(prediction, truth, gamma=GAMMA, alpha=ALPHA):
    x = prediction.astype(jnp.float32)
    y = truth.astype(jnp.float32)
    bce = jnp.maximum(x, 0.0) - x * y + jnp.log1p(jnp.exp(-jnp.abs(x)))
    p = jax.nn.sigmoid(x)
    p_t = y * p + (1.0 - y) * (1.0 - p)
    af = y * alpha + (1.0 - y) * (1.0 - alpha)
    mf = (1.0 - p_t) ** gamma
    return jnp.mean(bce * af * mf)


if __name__ == "__main__":
    key = jax.random.PRNGKey(0)

    cases = [
        # (shape,            soft_targets, focal_loss kwargs)
        ((2, 4, 16, 16),     False, {}),                                          # default config, lane-aligned
        ((2, 3, 15, 17),     True,  {}),                                          # ragged tail -> masked tail block, soft targets
        ((2, 4, 64, 64),     False, {"target_row_tile": 64, "chunk_rows": 16}),   # 2-way split, multi-k, chunk loop
        ((2, 4, 48, 32),     False, {"target_row_tile": 48, "chunk_rows": 32}),   # remainder-chunk path
    ]

    for i, (shape, soft, kw) in enumerate(cases):
        key, k1, k2 = jax.random.split(key, 3)
        prediction = jax.random.normal(k1, shape, dtype=jnp.float32) * 3.0
        if soft:
            truth = jax.random.uniform(k2, shape, dtype=jnp.float32)
        else:
            truth = jax.random.bernoulli(k2, 0.3, shape).astype(jnp.float32)

        loss = jax.block_until_ready(focal_loss(prediction, truth, **kw))
        ref = _reference_focal_loss(prediction, truth)
        assert jnp.allclose(loss, ref, rtol=1e-5, atol=1e-6), (i, shape, loss, ref)

    print("KERNEL_OK")
</pallas_src>

<mosaic_0001>
module attributes {stable_mosaic.version = 11 : i64} {
  func.func @_focal_loss_kernel(%arg0: i32, %arg1: i32, %arg2: memref<16x128xf32, #tpu.memory_space<vmem>>, %arg3: memref<16x128xf32, #tpu.memory_space<vmem>>, %arg4: memref<1x8x128xf32, #tpu.memory_space<vmem>>) attributes {dimension_semantics = [#tpu.dimension_semantics<parallel>, #tpu.dimension_semantics<arbitrary>], iteration_bounds = array<i64: 1, 1>, scalar_prefetch = 0 : i64, scratch_operands = 0 : i64, tpu.core_type = #tpu.core_type<tc>, window_params = [{transform_indices = @transform_0, window_bounds = array<i64: 16, 128>}, {transform_indices = @transform_1, window_bounds = array<i64: 16, 128>}, {transform_indices = @transform_2, window_bounds = array<i64: 1, 8, 128>}]} {
    %c0_i32 = arith.constant 0 : i32
    %0 = arith.cmpi eq, %arg1, %c0_i32 : i32
    %1 = arith.extui %0 : i1 to i32
    %c0_i32_0 = arith.constant 0 : i32
    %2 = arith.cmpi ne, %1, %c0_i32_0 : i32
    scf.if %2 {
      %cst = arith.constant 0.000000e+00 : f32
      %14 = vector.broadcast %cst : f32 to vector<1x8x128xf32>
      %c0 = arith.constant 0 : index
      %c0_6 = arith.constant 0 : index
      %c0_7 = arith.constant 0 : index
      %15 = vector.load %arg4[%c0, %c0_6, %c0_7] : memref<1x8x128xf32, #tpu.memory_space<vmem>>, vector<1x8x128xf32>
      tpu.vector_store %arg4[%c0, %c0_6, %c0_7], %14 {strides = array<i32>} : memref<1x8x128xf32, #tpu.memory_space<vmem>>, vector<1x8x128xf32>,
    } else {
    }
    %c1_i32 = arith.constant 1 : i32
    %3 = arith.muli %arg0, %c1_i32 : i32
    %4 = arith.addi %3, %arg1 : i32
    %c16_i32 = arith.constant 16 : i32
    %5 = arith.muli %4, %c16_i32 : i32
    %c1_i32_1 = arith.constant 1 : i32
    %6 = arith.addi %4, %c1_i32_1 : i32
    %c16_i32_2 = arith.constant 16 : i32
    %7 = arith.muli %6, %c16_i32_2 : i32
    %c16_i32_3 = arith.constant 16 : i32
    %8 = arith.cmpi sgt, %7, %c16_i32_3 : i32
    %true = arith.constant true
    %9 = arith.xori %8, %true : i1
    %10 = arith.extui %9 : i1 to i32
    %c0_i32_4 = arith.constant 0 : i32
    %11 = arith.cmpi ne, %10, %c0_i32_4 : i32
    scf.if %11 {
      %c0 = arith.constant 0 : index
      %c0_6 = arith.constant 0 : index
      %14 = vector.load %arg2[%c0, %c0_6] : memref<16x128xf32, #tpu.memory_space<vmem>>, vector<16x128xf32>
      %c0_7 = arith.constant 0 : index
      %c0_8 = arith.constant 0 : index
      %15 = vector.load %arg3[%c0_7, %c0_8] : memref<16x128xf32, #tpu.memory_space<vmem>>, vector<16x128xf32>
      %16 = math.absf %14 : vector<16x128xf32>
      %cst = arith.constant 0.000000e+00 : f32
      %17 = vector.broadcast %cst : f32 to vector<16x128xf32>
      %18 = arith.subf %17, %16 : vector<16x128xf32>
      %19 = math.exp %18 : vector<16x128xf32>
      %cst_9 = arith.constant 0.000000e+00 : f32
      %20 = vector.broadcast %cst_9 : f32 to vector<16x128xf32>
      %21 = arith.maximumf %14, %20 : vector<16x128xf32>
      %22 = arith.mulf %14, %15 : vector<16x128xf32>
      %23 = arith.subf %21, %22 : vector<16x128xf32>
      %24 = math.log1p %19 : vector<16x128xf32>
      %25 = arith.addf %23, %24 : vector<16x128xf32>
      %cst_10 = arith.constant 1.000000e+00 : f32
      %26 = vector.broadcast %cst_10 : f32 to vector<16x128xf32>
      %27 = arith.addf %26, %19 : vector<16x128xf32>
      %28 = tpu.reciprocal %27 {approx = true} : vector<16x128xf32> -> vector<16x128xf32>
      %29 = arith.mulf %27, %28 : vector<16x128xf32>
      %cst_11 = arith.constant 2.000000e+00 : f32
      %30 = vector.broadcast %cst_11 : f32 to vector<16x128xf32>
      %31 = arith.subf %30, %29 : vector<16x128xf32>
      %32 = arith.mulf %28, %31 : vector<16x128xf32>
      %cst_12 = arith.constant 0.000000e+00 : f32
      %33 = vector.broadcast %cst_12 : f32 to vector<16x128xf32>
      %34 = arith.cmpf oge, %14, %33 : vector<16x128xf32>
      %35 = arith.mulf %19, %32 : vector<16x128xf32>
      %36 = arith.select %34, %32, %35 : vector<16x128xi1>, vector<16x128xf32>
      %37 = arith.addf %36, %15 : vector<16x128xf32>
      %cst_13 = arith.constant 2.000000e+00 : f32
      %38 = vector.broadcast %cst_13 : f32 to vector<16x128xf32>
      %39 = arith.mulf %38, %15 : vector<16x128xf32>
      %40 = arith.mulf %39, %36 : vector<16x128xf32>
      %41 = arith.subf %37, %40 : vector<16x128xf32>
      %cst_14 = arith.constant 0.000000e+00 : f32
      %42 = vector.broadcast %cst_14 : f32 to vector<16x128xf32>
      %43 = arith.maximumf %41, %42 : vector<16x128xf32>
      %cst_15 = arith.constant -5.000000e-01 : f32
      %44 = vector.broadcast %cst_15 : f32 to vector<16x128xf32>
      %45 = arith.mulf %15, %44 : vector<16x128xf32>
      %cst_16 = arith.constant 7.500000e-01 : f32
      %46 = vector.broadcast %cst_16 : f32 to vector<16x128xf32>
      %47 = arith.addf %46, %45 : vector<16x128xf32>
      %48 = math.sqrt %43 : vector<16x128xf32>
      %49 = arith.mulf %43, %48 : vector<16x128xf32>
      %50 = arith.mulf %25, %47 : vector<16x128xf32>
      %51 = arith.mulf %50, %49 : vector<16x128xf32>
      %52 = vector.shape_cast %51 : vector<16x128xf32> to vector<2x8x128xf32>
      %cst_17 = arith.constant dense<0.000000e+00> : vector<8x128xf32>
      %53 = vector.multi_reduction <add>, %52, %cst_17 [0] : vector<2x8x128xf32> to vector<8x128xf32>
      %c0_18 = arith.constant 0 : index
      %c0_19 = arith.constant 0 : index
      %c0_20 = arith.constant 0 : index
      %54 = vector.load %arg4[%c0_18, %c0_19, %c0_20] : memref<1x8x128xf32, #tpu.memory_space<vmem>>, vector<1x8x128xf32>
      %55 = vector.shape_cast %54 : vector<1x8x128xf32> to vector<8x128xf32>
      %56 = arith.addf %55, %53 : vector<8x128xf32>
      %c0_21 = arith.constant 0 : index
      %c0_22 = arith.constant 0 : index
      %c0_23 = arith.constant 0 : index
      %57 = vector.load %arg4[%c0_21, %c0_22, %c0_23] : memref<1x8x128xf32, #tpu.memory_space<vmem>>, vector<1x8x128xf32>
      %58 = vector.shape_cast %57 : vector<1x8x128xf32> to vector<8x128xf32>
      %59 = vector.shape_cast %56 : vector<8x128xf32> to vector<1x8x128xf32>
      tpu.vector_store %arg4[%c0_21, %c0_22, %c0_23], %59 {strides = array<i32>} : memref<1x8x128xf32, #tpu.memory_space<vmem>>, vector<1x8x128xf32>,
    } else {
    }
    %12 = arith.extui %8 : i1 to i32
    %c0_i32_5 = arith.constant 0 : i32
    %13 = arith.cmpi ne, %12, %c0_i32_5 : i32
    scf.if %13 {
      %c0 = arith.constant 0 : index
      %c0_6 = arith.constant 0 : index
      %14 = vector.load %arg2[%c0, %c0_6] : memref<16x128xf32, #tpu.memory_space<vmem>>, vector<16x128xf32>
      %c0_7 = arith.constant 0 : index
      %c0_8 = arith.constant 0 : index
      %15 = vector.load %arg3[%c0_7, %c0_8] : memref<16x128xf32, #tpu.memory_space<vmem>>, vector<16x128xf32>
      %16 = math.absf %14 : vector<16x128xf32>
      %cst = arith.constant 0.000000e+00 : f32
      %17 = vector.broadcast %cst : f32 to vector<16x128xf32>
      %18 = arith.subf %17, %16 : vector<16x128xf32>
      %19 = math.exp %18 : vector<16x128xf32>
      %cst_9 = arith.constant 0.000000e+00 : f32
      %20 = vector.broadcast %cst_9 : f32 to vector<16x128xf32>
      %21 = arith.maximumf %14, %20 : vector<16x128xf32>
      %22 = arith.mulf %14, %15 : vector<16x128xf32>
      %23 = arith.subf %21, %22 : vector<16x128xf32>
      %24 = math.log1p %19 : vector<16x128xf32>
      %25 = arith.addf %23, %24 : vector<16x128xf32>
      %cst_10 = arith.constant 1.000000e+00 : f32
      %26 = vector.broadcast %cst_10 : f32 to vector<16x128xf32>
      %27 = arith.addf %26, %19 : vector<16x128xf32>
      %28 = tpu.reciprocal %27 {approx = true} : vector<16x128xf32> -> vector<16x128xf32>
      %29 = arith.mulf %27, %28 : vector<16x128xf32>
      %cst_11 = arith.constant 2.000000e+00 : f32
      %30 = vector.broadcast %cst_11 : f32 to vector<16x128xf32>
      %31 = arith.subf %30, %29 : vector<16x128xf32>
      %32 = arith.mulf %28, %31 : vector<16x128xf32>
      %cst_12 = arith.constant 0.000000e+00 : f32
      %33 = vector.broadcast %cst_12 : f32 to vector<16x128xf32>
      %34 = arith.cmpf oge, %14, %33 : vector<16x128xf32>
      %35 = arith.mulf %19, %32 : vector<16x128xf32>
      %36 = arith.select %34, %32, %35 : vector<16x128xi1>, vector<16x128xf32>
      %37 = arith.addf %36, %15 : vector<16x128xf32>
      %cst_13 = arith.constant 2.000000e+00 : f32
      %38 = vector.broadcast %cst_13 : f32 to vector<16x128xf32>
      %39 = arith.mulf %38, %15 : vector<16x128xf32>
      %40 = arith.mulf %39, %36 : vector<16x128xf32>
      %41 = arith.subf %37, %40 : vector<16x128xf32>
      %cst_14 = arith.constant 0.000000e+00 : f32
      %42 = vector.broadcast %cst_14 : f32 to vector<16x128xf32>
      %43 = arith.maximumf %41, %42 : vector<16x128xf32>
      %cst_15 = arith.constant -5.000000e-01 : f32
      %44 = vector.broadcast %cst_15 : f32 to vector<16x128xf32>
      %45 = arith.mulf %15, %44 : vector<16x128xf32>
      %cst_16 = arith.constant 7.500000e-01 : f32
      %46 = vector.broadcast %cst_16 : f32 to vector<16x128xf32>
      %47 = arith.addf %46, %45 : vector<16x128xf32>
      %48 = math.sqrt %43 : vector<16x128xf32>
      %49 = arith.mulf %43, %48 : vector<16x128xf32>
      %50 = arith.mulf %25, %47 : vector<16x128xf32>
      %51 = arith.mulf %50, %49 : vector<16x128xf32>
      %c0_i32_17 = arith.constant 0 : i32
      %52 = arith.addi %5, %c0_i32_17 : i32
      %53 = tpu.iota {dimensions = array<i32: 0>} : vector<16x128xi32>
      %54 = vector.broadcast %52 : i32 to vector<16x128xi32>
      %55 = arith.addi %54, %53 : vector<16x128xi32>
      %56 = tpu.iota {dimensions = array<i32: 1>} : vector<16x128xi32>
      %c16_i32_18 = arith.constant 16 : i32
      %57 = vector.broadcast %c16_i32_18 : i32 to vector<16x128xi32>
      %58 = arith.cmpi slt, %55, %57 : vector<16x128xi32>
      %c16_i32_19 = arith.constant 16 : i32
      %59 = vector.broadcast %c16_i32_19 : i32 to vector<16x128xi32>
      %60 = arith.cmpi eq, %55, %59 : vector<16x128xi32>
      %c0_i32_20 = arith.constant 0 : i32
      %61 = vector.broadcast %c0_i32_20 : i32 to vector<16x128xi32>
      %62 = arith.cmpi slt, %56, %61 : vector<16x128xi32>
      %63 = arith.andi %60, %62 : vector<16x128xi1>
      %64 = arith.ori %58, %63 : vector<16x128xi1>
      %cst_21 = arith.constant 0.000000e+00 : f32
      %65 = vector.broadcast %cst_21 : f32 to vector<16x128xf32>
      %66 = arith.select %64, %51, %65 : vector<16x128xi1>, vector<16x128xf32>
      %67 = vector.shape_cast %66 : vector<16x128xf32> to vector<2x8x128xf32>
      %cst_22 = arith.constant dense<0.000000e+00> : vector<8x128xf32>
      %68 = vector.multi_reduction <add>, %67, %cst_22 [0] : vector<2x8x128xf32> to vector<8x128xf32>
      %c0_23 = arith.constant 0 : index
      %c0_24 = arith.constant 0 : index
      %c0_25 = arith.constant 0 : index
      %69 = vector.load %arg4[%c0_23, %c0_24, %c0_25] : memref<1x8x128xf32, #tpu.memory_space<vmem>>, vector<1x8x128xf32>
      %70 = vector.shape_cast %69 : vector<1x8x128xf32> to vector<8x128xf32>
      %71 = arith.addf %70, %68 : vector<8x128xf32>
      %c0_26 = arith.constant 0 : index
      %c0_27 = arith.constant 0 : index
      %c0_28 = arith.constant 0 : index
      %72 = vector.load %arg4[%c0_26, %c0_27, %c0_28] : memref<1x8x128xf32, #tpu.memory_space<vmem>>, vector<1x8x128xf32>
      %73 = vector.shape_cast %72 : vector<1x8x128xf32> to vector<8x128xf32>
      %74 = vector.shape_cast %71 : vector<8x128xf32> to vector<1x8x128xf32>
      tpu.vector_store %arg4[%c0_26, %c0_27, %c0_28], %74 {strides = array<i32>} : memref<1x8x128xf32, #tpu.memory_space<vmem>>, vector<1x8x128xf32>,
    } else {
    }
    return
  }
  func.func @transform_0(%arg0: i32, %arg1: i32) -> (i32, i32) {
    %c1_i32 = arith.constant 1 : i32
    %0 = arith.muli %arg0, %c1_i32 : i32
    %1 = arith.addi %0, %arg1 : i32
    %c0_i32 = arith.constant 0 : i32
    %c0_i32_0 = arith.constant 0 : i32
    return %1, %c0_i32 : i32, i32
  }
  func.func @transform_1(%arg0: i32, %arg1: i32) -> (i32, i32) {
    %c1_i32 = arith.constant 1 : i32
    %0 = arith.muli %arg0, %c1_i32 : i32
    %1 = arith.addi %0, %arg1 : i32
    %c0_i32 = arith.constant 0 : i32
    %c0_i32_0 = arith.constant 0 : i32
    return %1, %c0_i32 : i32, i32
  }
  func.func @transform_2(%arg0: i32, %arg1: i32) -> (i32, i32, i32) {
    %c0_i32 = arith.constant 0 : i32
    %c0_i32_0 = arith.constant 0 : i32
    %c0_i32_1 = arith.constant 0 : i32
    return %arg0, %c0_i32, %c0_i32_0 : i32, i32, i32
  }
}

</mosaic_0001>

<llo_original>
// kernel: tpu_custom_call.1
$region0: #{tpu_custom_call.1}
  #allocation0 [shape = 'u32[]', space=smem, size = 0x4, offset = 0x4, fixed_abs, tag = 'smem constant byte address 0x4 - core index']
  #allocation1 [shape = 'u32[144,128]{1,0:T(1,128)}', space=vmem, size = 0x12000, scoped, tag = 'internal scratch']
  %s0 = inlined_call_operand.hbm [shape: f32[16,128], index: 0, kind: input, shape index: {}]
  %s1 = inlined_call_operand.hbm [shape: f32[16,128], index: 1, kind: input, shape index: {}]
  %s2 = inlined_call_operand.hbm [shape: f32[1,8,128], index: 2, kind: output, shape index: {}]
  %s3 = sld [smem:[#allocation0]]
  $region38: #{tpu_custom_call.1} parent=0
    _
  %s5 = ssub.s32 1, %s3
  %s6 = scalar_select 0, %s5, %s3
  $region1: #{tpu_custom_call.1} parent=0
    #allocation2 [shape = 'u8[8192]{0}', space=vmem, size = 0x2000, scoped, tag = 'input window, operand 0, single buffered']
    #allocation3 [shape = 's32[1]{0}', space=sflag, size = 0x4, scoped, tag = 'scoped memory for tpu_custom_call.1']
    #allocation4 [shape = 's32[1]{0}', space=sflag, size = 0x4, scoped, tag = 'scoped memory for tpu_custom_call.1']
    #allocation5 [shape = 'u8[8192]{0}', space=vmem, size = 0x2000, scoped, tag = 'input window, operand 1, single buffered']
    #allocation6 [shape = 's32[1]{0}', space=sflag, size = 0x4, scoped, tag = 'scoped memory for tpu_custom_call.1']
    #allocation7 [shape = 'u8[4096]{0}', space=vmem, size = 0x1000, scoped, tag = 'output window, operand 0, single buffered']
    %7 = vsyncpa [#allocation3], 0
    %8 = vsyncpa [#allocation6], 0
    %9 = vsyncpa [#allocation4], 0
    // Predicated region
    $region2: #{tpu_custom_call.1} parent=1 // pred_check
      _
    $region3: #{tpu_custom_call.1} parent=1 // pred_check_branch
      %11 = sbr.rel (0) target = $region5
    $region4: #{tpu_custom_call.1} parent=1 // pred_region
      %s12 = sadd.s32 0, 0
      %s13 = smul.u32 2, %s12
      %s15 = ssub.s32 256, 256
      %16 = vsyncadd [#allocation3], %s15
      %s17 = smul.addr %s13, 128
      %s18 = scalar_lea.hbm %s0, %s17
      %s19 = sshll.u32 [#allocation2], 4
      %s20 = int_to_ptr.vmem [resolvable:$true] %s19
      %25 = dma.hbm_to_vmem [thread:$0]  %s18, 256, %s20, [#allocation3], 128, 128, 8
    $region5: #{tpu_custom_call.1} parent=1 // pred_fallthru
      _
    // Predicated region
    $region6: #{tpu_custom_call.1} parent=1 // pred_check
      _
    $region7: #{tpu_custom_call.1} parent=1 // pred_check_branch
      %27 = sbr.rel (0) target = $region9
    $region8: #{tpu_custom_call.1} parent=1 // pred_region
      %s28 = sadd.s32 0, 0
      %s29 = smul.u32 2, %s28
      %s31 = ssub.s32 256, 256
      %32 = vsyncadd [#allocation6], %s31
      %s33 = smul.addr %s29, 128
      %s34 = scalar_lea.hbm %s1, %s33
      %s35 = sshll.u32 [#allocation5], 4
      %s36 = int_to_ptr.vmem [resolvable:$true] %s35
      %41 = dma.hbm_to_vmem [thread:$0]  %s34, 256, %s36, [#allocation6], 128, 128, 8
    $region9: #{tpu_custom_call.1} parent=1 // pred_fallthru
      _
    // Predicated region
    $region10: #{tpu_custom_call.1} parent=1 // pred_check
      _
    $region11: #{tpu_custom_call.1} parent=1 // pred_check_branch
      %43 = sbr.rel (0) target = $region13
    $region12: #{tpu_custom_call.1} parent=1 // pred_region
      %44 = dma.done [#allocation3], 256
    $region13: #{tpu_custom_call.1} parent=1 // pred_fallthru
      _
    // Predicated region
    $region14: #{tpu_custom_call.1} parent=1 // pred_check
      _
    $region15: #{tpu_custom_call.1} parent=1 // pred_check_branch
      %46 = sbr.rel (0) target = $region17
    $region16: #{tpu_custom_call.1} parent=1 // pred_region
      %47 = dma.done [#allocation6], 256
    $region17: #{tpu_custom_call.1} parent=1 // pred_fallthru
      _
    %s48 = sadd.s32 0, 0
    %s49 = smul.u32 2, %s48
    %s50 = sadd.s32 0, 0
    %s51 = smul.u32 2, %s50
    %p52 = scmp.eq.s32.totalorder 0, 0
    // Predicated region
    $region18: #{tpu_custom_call.1} parent=1 // pred_check
      %p53 = pneg %p52
    $region19: #{tpu_custom_call.1} parent=1 // pred_check_branch
      %55 = sbr.rel (%p53) target = $region21
    $region20: #{tpu_custom_call.1} parent=1 // pred_region
      %56 = vst [vmem:[#allocation7] sm:$0xff] 0.0
    $region21: #{tpu_custom_call.1} parent=1 // pred_fallthru
      _
    %s57 = sadd.s32 0, 0
    %s58 = smul.u32 %s57, 16
    %s59 = sadd.s32 %s57, 1
    %s60 = smul.u32 %s59, 16
    %p61 = scmp.gt.s32.totalorder %s60, 16
    %p62 = scmp.le.s32.totalorder %s60, 16
    // Predicated region
    $region22: #{tpu_custom_call.1} parent=1 // pred_check
      %p63 = pneg %p62
    $region23: #{tpu_custom_call.1} parent=1 // pred_check_branch
      %65 = sbr.rel (%p63) target = $region25
    $region24: #{tpu_custom_call.1} parent=1 // pred_region
      %v66 = vld [vmem:[#allocation2] sm:$0xff]
      %v67 = vld [vmem:[#allocation2 + $0x8] sm:$0xff]
      %v68 = vld [vmem:[#allocation5] sm:$0xff]
      %v69 = vld [vmem:[#allocation5 + $0x8] sm:$0xff]
      %v70 = vand.u32 2147483647, %v66
      %v71 = vand.u32 2147483647, %v67
      %v72 = vsub.f32 0.0, %v70
      %v73 = vsub.f32 0.0, %v71
      %v74 = vmul.f32 %v72, 1.442695
      %v75 = vpow.pop %v74
      %v76 = vmul.f32 %v73, 1.442695
      %v77 = vpow.pop %v76
      %v78 = vmax.f32 %v66, 0.0
      %v79 = vmax.f32 %v67, 0.0
      %v80 = vmul.f32 %v66, %v68
      %v81 = vmul.f32 %v67, %v69
      %v82 = vsub.f32 %v78, %v80
      %v83 = vsub.f32 %v79, %v81
      %v84 = vadd.f32 %v75, 1.0
      %v85 = vlog2.pop %v84
      %v86 = vmul.f32 %v85, 0.6931472
      %v87 = vmul.f32 -0.5, %v75
      %v88 = vadd.f32 %v87, 1.0
      %v89 = vmul.f32 %v88, %v75
      %v90 = vand.u32 2147483647, %v75
      %vm91 = vcmp.lt.f32.partialorder %v90, 0.0004427343
      %v92 = vsel %vm91, %v89, %v86
      %v93 = vadd.f32 %v77, 1.0
      %v94 = vlog2.pop %v93
      %v95 = vmul.f32 %v94, 0.6931472
      %v96 = vmul.f32 -0.5, %v77
      %v97 = vadd.f32 %v96, 1.0
      %v98 = vmul.f32 %v97, %v77
      %v99 = vand.u32 2147483647, %v77
      %vm100 = vcmp.lt.f32.partialorder %v99, 0.0004427343
      %v101 = vsel %vm100, %v98, %v95
      %v102 = vadd.f32 %v82, %v92
      %v103 = vadd.f32 %v83, %v101
      %v104 = vadd.f32 %v75, 1.0
      %v105 = vadd.f32 %v77, 1.0
      %v106 = vrcp.pop %v104
      %v107 = vrcp.pop %v105
      %v108 = vmul.f32 %v104, %v106
      %v109 = vmul.f32 %v105, %v107
      %v110 = vsub.f32 2.0, %v108
      %v111 = vsub.f32 2.0, %v109
      %v112 = vmul.f32 %v106, %v110
      %v113 = vmul.f32 %v107, %v111
      %vm114 = vcmp.ge.f32.partialorder %v66, 0.0
      %vm115 = vcmp.ge.f32.partialorder %v67, 0.0
      %v116 = vmul.f32 %v75, %v112
      %v117 = vmul.f32 %v77, %v113
      %v118 = vsel %vm114, %v112, %v116
      %v119 = vsel %vm115, %v113, %v117
      %v120 = vadd.f32 %v118, %v68
      %v121 = vadd.f32 %v119, %v69
      %v122 = vmul.f32 %v68, 2.0
      %v123 = vmul.f32 %v69, 2.0
      %v124 = vmul.f32 %v122, %v118
      %v125 = vmul.f32 %v123, %v119
      %v126 = vsub.f32 %v120, %v124
      %v127 = vsub.f32 %v121, %v125
      %v128 = vmax.f32 %v126, 0.0
      %v129 = vmax.f32 %v127, 0.0
      %v130 = vmul.f32 %v68, -0.5
      %v131 = vmul.f32 %v69, -0.5
      %v132 = vadd.f32 %v130, 0.75
      %v133 = vadd.f32 %v131, 0.75
      %v134 = vrsqrt.pop %v128
      %v135 = vmul.f32 %v128, %v134
      %vm136 = vcmp.eq.f32.partialorder %v128, inf
      %v137 = vsel %vm136, %v128, %v135
      %vm138 = vcmp.eq.f32.partialorder %v128, 0.0
      %v139 = vand.u32 %v128, 2147483648
      %v140 = vsel %vm138, %v139, %v137
      %v141 = vrsqrt.pop %v129
      %v142 = vmul.f32 %v129, %v141
      %vm143 = vcmp.eq.f32.partialorder %v129, inf
      %v144 = vsel %vm143, %v129, %v142
      %vm145 = vcmp.eq.f32.partialorder %v129, 0.0
      %v146 = vand.u32 %v129, 2147483648
      %v147 = vsel %vm145, %v146, %v144
      %v148 = vmul.f32 %v128, %v140
      %v149 = vmul.f32 %v129, %v147
      %v150 = vmul.f32 %v102, %v132
      %v151 = vmul.f32 %v103, %v133
      %v152 = vmul.f32 %v150, %v148
      %v153 = vmul.f32 %v151, %v149
      %v154 = vadd.f32 %v152, %v153
      %v155 = vld [vmem:[#allocation7] sm:$0xff]
      %v156 = vadd.f32 %v155, %v154
      %157 = vst [vmem:[#allocation7] sm:$0xff] %v156
    $region25: #{tpu_custom_call.1} parent=1 // pred_fallthru
      _
    // Predicated region
    $region26: #{tpu_custom_call.1} parent=1 // pred_check
      %p158 = pneg %p61
    $region27: #{tpu_custom_call.1} parent=1 // pred_check_branch
      %160 = sbr.rel (%p158) target = $region29
    $region28: #{tpu_custom_call.1} parent=1 // pred_region
      %v161 = vld [vmem:[#allocation2] sm:$0xff]
      %v162 = vld [vmem:[#allocation2 + $0x8] sm:$0xff]
      %v163 = vld [vmem:[#allocation5] sm:$0xff]
      %v164 = vld [vmem:[#allocation5 + $0x8] sm:$0xff]
      %v165 = vand.u32 2147483647, %v161
      %v166 = vand.u32 2147483647, %v162
      %v167 = vsub.f32 0.0, %v165
      %v168 = vsub.f32 0.0, %v166
      %v169 = vmul.f32 %v167, 1.442695
      %v170 = vpow.pop %v169
      %v171 = vmul.f32 %v168, 1.442695
      %v172 = vpow.pop %v171
      %v173 = vmax.f32 %v161, 0.0
      %v174 = vmax.f32 %v162, 0.0
      %v175 = vmul.f32 %v161, %v163
      %v176 = vmul.f32 %v162, %v164
      %v177 = vsub.f32 %v173, %v175
      %v178 = vsub.f32 %v174, %v176
      %v179 = vadd.f32 %v170, 1.0
      %v180 = vlog2.pop %v179
      %v181 = vmul.f32 %v180, 0.6931472
      %v182 = vmul.f32 -0.5, %v170
      %v183 = vadd.f32 %v182, 1.0
      %v184 = vmul.f32 %v183, %v170
      %v185 = vand.u32 2147483647, %v170
      %vm186 = vcmp.lt.f32.partialorder %v185, 0.0004427343
      %v187 = vsel %vm186, %v184, %v181
      %v188 = vadd.f32 %v172, 1.0
      %v189 = vlog2.pop %v188
      %v190 = vmul.f32 %v189, 0.6931472
      %v191 = vmul.f32 -0.5, %v172
      %v192 = vadd.f32 %v191, 1.0
      %v193 = vmul.f32 %v192, %v172
      %v194 = vand.u32 2147483647, %v172
      %vm195 = vcmp.lt.f32.partialorder %v194, 0.0004427343
      %v196 = vsel %vm195, %v193, %v190
      %v197 = vadd.f32 %v177, %v187
      %v198 = vadd.f32 %v178, %v196
      %v199 = vadd.f32 %v170, 1.0
      %v200 = vadd.f32 %v172, 1.0
      %v201 = vrcp.pop %v199
      %v202 = vrcp.pop %v200
      %v203 = vmul.f32 %v199, %v201
      %v204 = vmul.f32 %v200, %v202
      %v205 = vsub.f32 2.0, %v203
      %v206 = vsub.f32 2.0, %v204
      %v207 = vmul.f32 %v201, %v205
      %v208 = vmul.f32 %v202, %v206
      %vm209 = vcmp.ge.f32.partialorder %v161, 0.0
      %vm210 = vcmp.ge.f32.partialorder %v162, 0.0
      %v211 = vmul.f32 %v170, %v207
      %v212 = vmul.f32 %v172, %v208
      %v213 = vsel %vm209, %v207, %v211
      %v214 = vsel %vm210, %v208, %v212
      %v215 = vadd.f32 %v213, %v163
      %v216 = vadd.f32 %v214, %v164
      %v217 = vmul.f32 %v163, 2.0
      %v218 = vmul.f32 %v164, 2.0
      %v219 = vmul.f32 %v217, %v213
      %v220 = vmul.f32 %v218, %v214
      %v221 = vsub.f32 %v215, %v219
      %v222 = vsub.f32 %v216, %v220
      %v223 = vmax.f32 %v221, 0.0
      %v224 = vmax.f32 %v222, 0.0
      %v225 = vmul.f32 %v163, -0.5
      %v226 = vmul.f32 %v164, -0.5
      %v227 = vadd.f32 %v225, 0.75
      %v228 = vadd.f32 %v226, 0.75
      %v229 = vrsqrt.pop %v223
      %v230 = vmul.f32 %v223, %v229
      %vm231 = vcmp.eq.f32.partialorder %v223, inf
      %v232 = vsel %vm231, %v223, %v230
      %vm233 = vcmp.eq.f32.partialorder %v223, 0.0
      %v234 = vand.u32 %v223, 2147483648
      %v235 = vsel %vm233, %v234, %v232
      %v236 = vrsqrt.pop %v224
      %v237 = vmul.f32 %v224, %v236
      %vm238 = vcmp.eq.f32.partialorder %v224, inf
      %v239 = vsel %vm238, %v224, %v237
      %vm240 = vcmp.eq.f32.partialorder %v224, 0.0
      %v241 = vand.u32 %v224, 2147483648
      %v242 = vsel %vm240, %v241, %v239
      %v243 = vmul.f32 %v223, %v235
      %v244 = vmul.f32 %v224, %v242
      %v245 = vmul.f32 %v197, %v227
      %v246 = vmul.f32 %v198, %v228
      %v247 = vmul.f32 %v245, %v243
      %v248 = vmul.f32 %v246, %v244
      %v249 = vlaneseq
      %v250 = vshrl.u32 %v249, 7
      %v251 = vadd.s32 %v250, 8
      %v252 = vstv %s58
      %v253 = vadd.s32 %v252, %v250
      %v254 = vadd.s32 %v252, %v251
      %v255 = vlaneseq
      %v256 = vand.u32 %v255, 127
      %vm257 = vcmp.lt.s32.totalorder %v253, 16
      %vm258 = vcmp.lt.s32.totalorder %v254, 16
      %vm259 = vcmp.eq.s32.totalorder %v253, 16
      %vm260 = vcmp.eq.s32.totalorder %v254, 16
      %vm261 = vcmp.lt.s32.totalorder %v256, 0
      %vm262 = vmand %vm259, %vm261
      %vm263 = vmand %vm260, %vm261
      %vm264 = vmor %vm257, %vm262
      %vm265 = vmor %vm258, %vm263
      %v266 = vsel %vm264, %v247, 0.0
      %v267 = vsel %vm265, %v248, 0.0
      %v268 = vadd.f32 %v266, %v267
      %v269 = vld [vmem:[#allocation7] sm:$0xff]
      %v270 = vadd.f32 %v269, %v268
      %271 = vst [vmem:[#allocation7] sm:$0xff] %v270
    $region29: #{tpu_custom_call.1} parent=1 // pred_fallthru
      _
    // Predicated region
    $region30: #{tpu_custom_call.1} parent=1 // pred_check
      _
    $region31: #{tpu_custom_call.1} parent=1 // pred_check_branch
      %273 = sbr.rel (0) target = $region33
    $region32: #{tpu_custom_call.1} parent=1 // pred_region
      %s275 = ssub.s32 128, 128
      %276 = vsyncadd [#allocation4], %s275
      %s278 = sshll.u32 [#allocation7], 4
      %s279 = int_to_ptr.vmem [resolvable:$true] %s278
      %281 = dma.vmem_to_hbm [thread:$0]  %s279, 128, %s2, [#allocation4]
    $region33: #{tpu_custom_call.1} parent=1 // pred_fallthru
      _
    // Predicated region
    $region34: #{tpu_custom_call.1} parent=1 // pred_check
      _
    $region35: #{tpu_custom_call.1} parent=1 // pred_check_branch
      %283 = sbr.rel (0) target = $region37
    $region36: #{tpu_custom_call.1} parent=1 // pred_region
      %284 = dma.done [#allocation4], 128
    $region37: #{tpu_custom_call.1} parent=1 // pred_fallthru
      _
    %285 = vsyncpa [#allocation3], 1
    %286 = vsyncpa [#allocation6], 1
    %287 = vsyncpa [#allocation4], 1

</llo_original>
